<compile_context>
chip_gen: v6e
topology: v6e:2x2x1
jax: 0.10.0
libtpu: 0.0.40
codegen_flags: <defaults>
</compile_context>

<pallas_src>
import math

import jax
import jax.numpy as jnp
from jax import lax
from jax.experimental import pallas as pl
from jax.experimental.pallas import tpu as pltpu


# NT contraction: contract the last dim of both operands (== x @ W.T).
_NT_DIMS = (((1,), (1,)), ((), ()))
# Population-batched NT contraction: batch dim 0, contract last dims.
_POP_NT_DIMS = (((2,), (2,)), ((0,), (0,)))


def _make_nchl_kernel(n_layers: int, io_dtype):
    """Kernel over one batch tile: full MLP chain in natural (batch, feat) layout."""

    def kernel(*refs):
        x_ref = refs[0]                     # (TB, nodes[0])
        w_refs = refs[1:1 + n_layers]       # each (nodes[i+1], nodes[i])
        out_ref = refs[1 + n_layers]        # (TB, nodes[-1])

        h = x_ref[...]
        for idx, w_ref in enumerate(w_refs):
            # x @ W.T without materializing any transpose: NT dot_general.
            z = lax.dot_general(h, w_ref[...], dimension_numbers=_NT_DIMS,
                                preferred_element_type=jnp.float32)
            h = jnp.tanh(z)                 # f32 tanh on the EUP (v5e-safe)
            if idx + 1 < n_layers and io_dtype != jnp.float32:
                h = h.astype(io_dtype)      # keep dot operand dtypes matched
        out_ref[...] = h.astype(out_ref.dtype)

    return kernel


def nchl_forward(x, weights, *, tb: int = 4096,
                 io_dtype=jnp.float32, out_dtype=jnp.float32):
    """NCHL forward pass via a single batch-tiled Pallas kernel.

    x:        (batch, nodes[0])  (1-D inputs are promoted to batch=1)
    weights:  list of (nodes[i+1], nodes[i]) arrays (PyTorch nn.Linear layout)
    tb:       batch tile; sweep 1024-8192 (keep >=4096 on v7x so both TCs get
              work at realistic batch sizes).  Default fits the 32 MiB scoped
              VMEM default on all generations.
    io_dtype: dtype fed to the kernel/MXU (jnp.bfloat16 halves HBM traffic).
    """
    if x.ndim == 1:
        x = x[None, :]
    batch, in_dim = x.shape
    n_layers = len(weights)
    out_dim = weights[-1].shape[0]

    x = x.astype(io_dtype)
    weights = [w.astype(io_dtype) for w in weights]

    # Small batches: one full-extent tile (always legal, no padding).
    # Large batches: a big multiple-of-8 tile; the trailing partial block is
    # boundary-masked by Pallas, so no jnp.pad pass is needed.
    if batch <= tb:
        tb_eff = batch
    else:
        tb_eff = max(8, (tb // 8) * 8)
    n_tiles = pl.cdiv(batch, tb_eff)

    kernel = _make_nchl_kernel(n_layers, io_dtype)

    in_specs = [pl.BlockSpec((tb_eff, in_dim), lambda i: (i, 0))]
    for w in weights:
        # Constant index map -> weight fetched once, VMEM-resident across tiles.
        in_specs.append(pl.BlockSpec(w.shape, lambda i: (0, 0)))

    fn = pl.pallas_call(
        kernel,
        out_shape=jax.ShapeDtypeStruct((batch, out_dim), out_dtype),
        grid=(n_tiles,),
        in_specs=in_specs,
        out_specs=pl.BlockSpec((tb_eff, out_dim), lambda i: (i, 0)),
        compiler_params=pltpu.CompilerParams(
            # Batch tiles are independent -> shard across TCs on v7x.
            dimension_semantics=("parallel",),
        ),
    )
    return fn(x, *weights)


def _make_nchl_population_kernel(n_layers: int, io_dtype):
    """Kernel over a tile of PT networks: batched MLP chain, one net per batch slot."""

    def kernel(*refs):
        x_ref = refs[0]                     # (PT, B, nodes[0])
        w_refs = refs[1:1 + n_layers]       # each (PT, nodes[i+1], nodes[i])
        out_ref = refs[1 + n_layers]        # (PT, B, nodes[-1])

        h = x_ref[...]
        for idx, w_ref in enumerate(w_refs):
            z = lax.dot_general(h, w_ref[...], dimension_numbers=_POP_NT_DIMS,
                                preferred_element_type=jnp.float32)
            h = jnp.tanh(z)
            if idx + 1 < n_layers and io_dtype != jnp.float32:
                h = h.astype(io_dtype)
        out_ref[...] = h.astype(out_ref.dtype)

    return kernel


def nchl_forward_population(x, weights, *, pt: int = 32,
                            io_dtype=jnp.float32, out_dtype=jnp.float32):
    """Population-batched NCHL forward: P independent networks in ONE pallas_call.

    x:        (P, B, nodes[0])   -- per-network (tiny) batch
    weights:  list of (P, nodes[i+1], nodes[i]) arrays
    pt:       population tile (networks per grid step).
    """
    P, B, in_dim = x.shape
    n_layers = len(weights)
    out_dim = weights[-1].shape[1]

    x = x.astype(io_dtype)
    weights = [w.astype(io_dtype) for w in weights]

    pt_eff = min(pt, P)
    n_tiles = pl.cdiv(P, pt_eff)

    kernel = _make_nchl_population_kernel(n_layers, io_dtype)

    in_specs = [pl.BlockSpec((pt_eff, B, in_dim), lambda p: (p, 0, 0))]
    for w in weights:
        in_specs.append(pl.BlockSpec((pt_eff,) + w.shape[1:], lambda p: (p, 0, 0)))

    fn = pl.pallas_call(
        kernel,
        out_shape=jax.ShapeDtypeStruct((P, B, out_dim), out_dtype),
        grid=(n_tiles,),
        in_specs=in_specs,
        out_specs=pl.BlockSpec((pt_eff, B, out_dim), lambda p: (p, 0, 0)),
        compiler_params=pltpu.CompilerParams(
            dimension_semantics=("parallel",),
        ),
    )
    return fn(x, *weights)


def xavier_uniform(key, shape, gain):
    """Match torch.nn.init.xavier_uniform_ for nn.Linear weights (..., out, in)."""
    fan_out, fan_in = shape[-2], shape[-1]
    bound = gain * math.sqrt(6.0 / (fan_in + fan_out))
    return jax.random.uniform(key, shape, jnp.float32, -bound, bound)


def nchl_forward_ref(x, weights):
    """Pure-JAX reference (f32) for correctness checking."""
    if x.ndim == 1:
        x = x[None, :]
    h = x.astype(jnp.float32)
    for w in weights:
        h = jnp.tanh(h @ w.astype(jnp.float32).T)
    return h


def nchl_forward_population_ref(x, weights):
    h = x.astype(jnp.float32)
    for w in weights:
        h = jnp.tanh(jnp.einsum("pbi,poi->pbo", h, w.astype(jnp.float32)))
    return h


if __name__ == "__main__":
    # NCHL(nodes=[16, 32, 8]) with default xavier_uniform(gain=0.5) init.
    nodes = [16, 32, 8]
    n_layers = len(nodes) - 1

    key = jax.random.PRNGKey(0)
    keys = jax.random.split(key, 8)

    weights = [
        xavier_uniform(keys[i], (nodes[i + 1], nodes[i]), gain=0.5)
        for i in range(n_layers)
    ]

    # Case 1: multi-tile batch with a partial trailing tile (tb=128 forces
    # 3 grid steps at batch=300; exercises boundary masking, no pad pass).
    x_big = jax.random.normal(keys[2], (300, nodes[0]), jnp.float32)
    out_big = jax.block_until_ready(nchl_forward(x_big, weights, tb=128))
    ref_big = nchl_forward_ref(x_big, weights)
    assert out_big.shape == (300, nodes[-1])
    assert jnp.allclose(out_big, ref_big, atol=1e-5, rtol=1e-5), "batched mismatch"

    # Case 2: tiny batch (typical single-sample use) through the default
    # large-tile path (single full-extent tile).
    x_small = jax.random.normal(keys[3], (2, nodes[0]), jnp.float32)
    out_small = jax.block_until_ready(nchl_forward(x_small, weights))
    ref_small = nchl_forward_ref(x_small, weights)
    assert out_small.shape == (2, nodes[-1])
    assert jnp.allclose(out_small, ref_small, atol=1e-5, rtol=1e-5), "small mismatch"

    # Case 3: bf16 I/O path (halves HBM traffic on v6e/v7x); f32 accumulate +
    # f32 tanh inside, so only storage precision is reduced.
    out_bf16 = jax.block_until_ready(
        nchl_forward(x_big, weights, tb=128, io_dtype=jnp.bfloat16))
    assert jnp.allclose(out_bf16, ref_big, atol=5e-2, rtol=5e-2), "bf16 mismatch"

    # Case 4: population-batched variant — P networks, one pallas_call,
    # population tiled over the grid (pt=4 -> 3 tiles incl. a partial one).
    P, B = 10, 4
    w_pop = [
        xavier_uniform(keys[4 + i], (P, nodes[i + 1], nodes[i]), gain=0.5)
        for i in range(n_layers)
    ]
    x_pop = jax.random.normal(keys[6], (P, B, nodes[0]), jnp.float32)
    out_pop = jax.block_until_ready(nchl_forward_population(x_pop, w_pop, pt=4))
    ref_pop = nchl_forward_population_ref(x_pop, w_pop)
    assert out_pop.shape == (P, B, nodes[-1])
    assert jnp.allclose(out_pop, ref_pop, atol=1e-5, rtol=1e-5), "population mismatch"

    print("KERNEL_OK")
</pallas_src>

<mosaic_0001>
module attributes {stable_mosaic.version = 11 : i64} {
  func.func @kernel(%arg0: i32, %arg1: memref<128x16xf32, #tpu.memory_space<vmem>>, %arg2: memref<32x16xf32, #tpu.memory_space<vmem>>, %arg3: memref<8x32xf32, #tpu.memory_space<vmem>>, %arg4: memref<128x8xf32, #tpu.memory_space<vmem>>) attributes {dimension_semantics = [#tpu.dimension_semantics<parallel>], iteration_bounds = array<i64: 3>, scalar_prefetch = 0 : i64, scratch_operands = 0 : i64, tpu.core_type = #tpu.core_type<tc>, window_params = [{transform_indices = @transform_0, window_bounds = array<i64: 128, 16>}, {pipeline_mode = #tpu.pipeline_mode<synchronous>, transform_indices = @transform_1, window_bounds = array<i64: 32, 16>}, {pipeline_mode = #tpu.pipeline_mode<synchronous>, transform_indices = @transform_2, window_bounds = array<i64: 8, 32>}, {transform_indices = @transform_3, window_bounds = array<i64: 128, 8>}]} {
    %c0 = arith.constant 0 : index
    %c0_0 = arith.constant 0 : index
    %0 = vector.load %arg1[%c0, %c0_0] : memref<128x16xf32, #tpu.memory_space<vmem>>, vector<128x16xf32>
    %c0_1 = arith.constant 0 : index
    %c0_2 = arith.constant 0 : index
    %1 = vector.load %arg2[%c0_1, %c0_2] : memref<32x16xf32, #tpu.memory_space<vmem>>, vector<32x16xf32>
    %cst = arith.constant dense<0.000000e+00> : vector<128x32xf32>
    %2 = tpu.matmul %0, %1, %cst {dimension_numbers = #tpu.dot_dimension_numbers<[1], [1], [0], [0], [0, 0, 1, 0], [], []>} : vector<128x16xf32>, vector<32x16xf32>, vector<128x32xf32> -> vector<128x32xf32>
    %3 = math.tanh %2 : vector<128x32xf32>
    %c0_3 = arith.constant 0 : index
    %c0_4 = arith.constant 0 : index
    %4 = vector.load %arg3[%c0_3, %c0_4] : memref<8x32xf32, #tpu.memory_space<vmem>>, vector<8x32xf32>
    %cst_5 = arith.constant dense<0.000000e+00> : vector<128x8xf32>
    %5 = tpu.matmul %3, %4, %cst_5 {dimension_numbers = #tpu.dot_dimension_numbers<[1], [1], [0], [0], [0, 0, 1, 0], [], []>} : vector<128x32xf32>, vector<8x32xf32>, vector<128x8xf32> -> vector<128x8xf32>
    %6 = math.tanh %5 : vector<128x8xf32>
    %c0_6 = arith.constant 0 : index
    %c0_7 = arith.constant 0 : index
    %7 = vector.load %arg4[%c0_6, %c0_7] : memref<128x8xf32, #tpu.memory_space<vmem>>, vector<128x8xf32>
    tpu.vector_store %arg4[%c0_6, %c0_7], %6 {strides = array<i32>} : memref<128x8xf32, #tpu.memory_space<vmem>>, vector<128x8xf32>,
    return
  }
  func.func @transform_0(%arg0: i32) -> (i32, i32) {
    %c0_i32 = arith.constant 0 : i32
    %c0_i32_0 = arith.constant 0 : i32
    return %arg0, %c0_i32 : i32, i32
  }
  func.func @transform_1(%arg0: i32) -> (i32, i32) {
    %c0_i32 = arith.constant 0 : i32
    %c0_i32_0 = arith.constant 0 : i32
    %c0_i32_1 = arith.constant 0 : i32
    return %c0_i32, %c0_i32_0 : i32, i32
  }
  func.func @transform_2(%arg0: i32) -> (i32, i32) {
    %c0_i32 = arith.constant 0 : i32
    %c0_i32_0 = arith.constant 0 : i32
    %c0_i32_1 = arith.constant 0 : i32
    return %c0_i32, %c0_i32_0 : i32, i32
  }
  func.func @transform_3(%arg0: i32) -> (i32, i32) {
    %c0_i32 = arith.constant 0 : i32
    %c0_i32_0 = arith.constant 0 : i32
    return %arg0, %c0_i32 : i32, i32
  }
}

</mosaic_0001>

<llo_original>
// kernel: tpu_custom_call.1
$region0: #{tpu_custom_call.1}
  #allocation0 [shape = 'u32[]', space=smem, size = 0x4, offset = 0x4, fixed_abs, tag = 'smem constant byte address 0x4 - core index']
  #allocation1 [shape = 'u32[144,128]{1,0:T(1,128)}', space=vmem, size = 0x12000, scoped, tag = 'internal scratch']
  %s0 = inlined_call_operand.vmem [shape: f32[300,16], index: 0, kind: input, shape index: {}]
  %s1 = inlined_call_operand.vmem [shape: f32[32,16], index: 1, kind: input, shape index: {}]
  %s2 = inlined_call_operand.vmem [shape: f32[8,32], index: 2, kind: input, shape index: {}]
  %s3 = inlined_call_operand.vmem [shape: f32[300,8], index: 3, kind: output, shape index: {}]
  %s4 = sld [smem:[#allocation0]]
  $region93: #{tpu_custom_call.1} parent=0
    _
  %s6 = ssub.s32 1, %s4
  %s7 = scalar_select 0, %s6, %s4
  $region1: #{tpu_custom_call.1} parent=0
    #allocation2 [shape = 'u8[131072]{0}', space=vmem, size = 0x20000, scoped, tag = 'output window, operand 0']
    loop: start=0, step=1, limit=5
    $region2: #{tpu_custom_call.1} parent=1 // loop_pre_header
      _
    $region3: #{tpu_custom_call.1} parent=1 // loop_header
      %s9 = sphi 0, %s13
      %p10 = scmp.ge.s32.totalorder %s9, 5
      %s19 = sphi 0, %s21
      %s22 = sphi 0, %s19
      %s23 = sphi 0, %s22
      %s39 = sphi 0, %s23
      %s43 = sphi 0, %s43
      %s45 = sphi 0, %s43
      %s46 = sphi 0, %s45
      %s60 = sphi 0, %s46
      %s64 = sphi 0, %s64
      %s66 = sphi 0, %s64
      %s67 = sphi 0, %s66
      %s81 = sphi 0, %s67
      %s87 = sphi 0, %s89
      %s90 = sphi 0, %s87
      %s91 = sphi 0, %s90
      %s107 = sphi 0, %s91
    $region4: #{tpu_custom_call.1} parent=1 // loop_header_branch
      %12 = sbr.rel (%p10) target = $region8
    $region5: #{tpu_custom_call.1} parent=1 // loop_body
      %s14 = ssub.s32 %s9, 1
      %s15 = ssub.s32 %s9, 2
      %s16 = sadd.s32 %s9, 1
      %s17 = ssub.s32 %s9, %s16
      %p18 = scmp.eq.s32.totalorder %s17, 0
      %s20 = sadd.s32 %s19, 1
      %s21 = scalar_select %p18, %s19, %s20
      %p24 = pneg %p18
      %p25 = scmp.eq.s32.totalorder %s9, 2
      %p26 = por %p24, %p25
      %p27 = scmp.ne.s32.totalorder %s19, %s22
      %p28 = scmp.eq.s32.totalorder %s9, 0
      %p29 = por %p27, %p28
      %p30 = scmp.ne.s32.totalorder %s19, %s22
      %p31 = scmp.eq.s32.totalorder %s14, 2
      %p32 = por %p30, %p31
      %p33 = scmp.ne.s32.totalorder %s22, %s23
      %p34 = scmp.eq.s32.totalorder %s14, 0
      %p35 = por %p33, %p34
      %p36 = scmp.ne.s32.totalorder %s22, %s23
      %p37 = scmp.eq.s32.totalorder %s15, 2
      %p38 = por %p36, %p37
      %p40 = scmp.ne.s32.totalorder %s23, %s39
      %p41 = scmp.eq.s32.totalorder %s15, 0
      %p42 = por %p40, %p41
      %s44 = sadd.s32 %s43, 1
      %p47 = scmp.eq.s32.totalorder %s9, 2
      %p48 = scmp.ne.s32.totalorder %s43, %s45
      %p49 = scmp.eq.s32.totalorder %s9, 0
      %p50 = por %p48, %p49
      %p51 = scmp.ne.s32.totalorder %s43, %s45
      %p52 = scmp.eq.s32.totalorder %s14, 2
      %p53 = por %p51, %p52
      %p54 = scmp.ne.s32.totalorder %s45, %s46
      %p55 = scmp.eq.s32.totalorder %s14, 0
      %p56 = por %p54, %p55
      %p57 = scmp.ne.s32.totalorder %s45, %s46
      %p58 = scmp.eq.s32.totalorder %s15, 2
      %p59 = por %p57, %p58
      %p61 = scmp.ne.s32.totalorder %s46, %s60
      %p62 = scmp.eq.s32.totalorder %s15, 0
      %p63 = por %p61, %p62
      %s65 = sadd.s32 %s64, 1
      %p68 = scmp.eq.s32.totalorder %s9, 2
      %p69 = scmp.ne.s32.totalorder %s64, %s66
      %p70 = scmp.eq.s32.totalorder %s9, 0
      %p71 = por %p69, %p70
      %p72 = scmp.ne.s32.totalorder %s64, %s66
      %p73 = scmp.eq.s32.totalorder %s14, 2
      %p74 = por %p72, %p73
      %p75 = scmp.ne.s32.totalorder %s66, %s67
      %p76 = scmp.eq.s32.totalorder %s14, 0
      %p77 = por %p75, %p76
      %p78 = scmp.ne.s32.totalorder %s66, %s67
      %p79 = scmp.eq.s32.totalorder %s15, 2
      %p80 = por %p78, %p79
      %p82 = scmp.ne.s32.totalorder %s67, %s81
      %p83 = scmp.eq.s32.totalorder %s15, 0
      %p84 = por %p82, %p83
      %s85 = ssub.s32 %s9, %s16
      %p86 = scmp.eq.s32.totalorder %s85, 0
      %s88 = sadd.s32 %s87, 1
      %s89 = scalar_select %p86, %s87, %s88
      %p92 = pneg %p86
      %p93 = scmp.eq.s32.totalorder %s9, 2
      %p94 = por %p92, %p93
      %p95 = scmp.ne.s32.totalorder %s87, %s90
      %p96 = scmp.eq.s32.totalorder %s9, 0
      %p97 = por %p95, %p96
      %p98 = scmp.ne.s32.totalorder %s87, %s90
      %p99 = scmp.eq.s32.totalorder %s14, 2
      %p100 = por %p98, %p99
      %p101 = scmp.ne.s32.totalorder %s90, %s91
      %p102 = scmp.eq.s32.totalorder %s14, 0
      %p103 = por %p101, %p102
      %p104 = scmp.ne.s32.totalorder %s90, %s91
      %p105 = scmp.eq.s32.totalorder %s15, 2
      %p106 = por %p104, %p105
      %p108 = scmp.ne.s32.totalorder %s91, %s107
      %p109 = scmp.eq.s32.totalorder %s15, 0
      %p110 = por %p108, %p109
      %p111 = scmp.le.s32.totalorder 1, %s9
      %p112 = scmp.lt.s32.totalorder %s9, 4
      %p113 = pnand %p111, %p112
      %p114 = pneg %p113
      // Predicated region
      $region9: #{tpu_custom_call.1} parent=5 // pred_check
        _
      $region10: #{tpu_custom_call.1} parent=5 // pred_check_branch
        %116 = sbr.rel (%p113) target = $region12
      $region11: #{tpu_custom_call.1} parent=5 // pred_region
        %s117 = ssub.s32 %s9, 1
        // Predicated region
        $region13: #{tpu_custom_call.1} parent=11 // pred_check
          %p118 = pneg %p56
        $region14: #{tpu_custom_call.1} parent=11 // pred_check_branch
          %120 = sbr.rel (%p118) target = $region16
        $region15: #{tpu_custom_call.1} parent=11 // pred_region
          _
        $region16: #{tpu_custom_call.1} parent=11 // pred_fallthru
          _
        // Predicated region
        $region17: #{tpu_custom_call.1} parent=11 // pred_check
          %p121 = pneg %p77
        $region18: #{tpu_custom_call.1} parent=11 // pred_check_branch
          %123 = sbr.rel (%p121) target = $region20
        $region19: #{tpu_custom_call.1} parent=11 // pred_region
          _
        $region20: #{tpu_custom_call.1} parent=11 // pred_fallthru
          _
      $region12: #{tpu_custom_call.1} parent=5 // pred_fallthru
        _
      %p124 = scmp.lt.s32.totalorder %s9, 3
      // Predicated region
      $region21: #{tpu_custom_call.1} parent=5 // pred_check
        %p125 = pneg %p124
      $region22: #{tpu_custom_call.1} parent=5 // pred_check_branch
        %127 = sbr.rel (%p125) target = $region24
      $region23: #{tpu_custom_call.1} parent=5 // pred_region
        // Predicated region
        $region25: #{tpu_custom_call.1} parent=23 // pred_check
          %p128 = pneg %p29
        $region26: #{tpu_custom_call.1} parent=23 // pred_check_branch
          %130 = sbr.rel (%p128) target = $region28
        $region27: #{tpu_custom_call.1} parent=23 // pred_region
          %s131 = smul.u32 16, %s9
          %s132 = ssub.s32 38, %s131
          %p133 = scmp.lt.s32.totalorder %s132, 16
          %s134 = scalar_select %p133, %s132, 16
          %s135 = smul.u32 128, %s134
          %p136 = scmp.lt.s32.totalorder %s131, 37
          %s137 = scalar_select %p136, %s131, 37
          %s138 = smul.addr %s137, 8
          %s139 = scalar_lea.vmem %s0, %s138
          %s140 = smul.u32 16, %s9
          %s141 = ssub.s32 38, %s140
          %p142 = scmp.lt.s32.totalorder %s141, 16
          %s143 = scalar_select %p142, %s141, 16
          %s144 = smul.u32 128, %s143
        $region28: #{tpu_custom_call.1} parent=23 // pred_fallthru
          _
      $region24: #{tpu_custom_call.1} parent=5 // pred_fallthru
        _
      %p145 = scmp.le.s32.totalorder 1, %s9
      %p146 = scmp.lt.s32.totalorder %s9, 4
      %p147 = pnand %p145, %p146
      %p148 = pneg %p147
      // Predicated region
      $region29: #{tpu_custom_call.1} parent=5 // pred_check
        _
      $region30: #{tpu_custom_call.1} parent=5 // pred_check_branch
        %150 = sbr.rel (%p147) target = $region32
      $region31: #{tpu_custom_call.1} parent=5 // pred_region
        %s151 = ssub.s32 %s9, 1
        %s152 = smul.u32 16, %s14
        %s153 = ssub.s32 38, %s152
        %p154 = scmp.lt.s32.totalorder %s153, 16
        %s155 = scalar_select %p154, %s153, 16
        %s156 = smul.u32 128, %s155
        %p157 = scmp.lt.s32.totalorder %s152, 37
        %s158 = scalar_select %p157, %s152, 37
        %s159 = smul.addr %s158, 8
        %s160 = scalar_lea.vmem %s0, %s159
        %p161 = pneg %p35
        %p162 = pneg %p32
        %p163 = pneg %p56
        %p164 = pneg %p53
        %p165 = pneg %p77
        %p166 = pneg %p74
        %p167 = pneg %p103
        %p168 = pneg %p100
        %s169 = sand.u32 %s90, 1
        %s170 = sand.u32 %s90, 1
        %s171 = smul.addr %s170, 128
        %s172 = scalar_lea.vmem [#allocation2], %s171
        %s173 = smul.u32 16, %s14
        %s174 = ssub.s32 38, %s173
        %p175 = scmp.lt.s32.totalorder %s174, 16
        %s176 = scalar_select %p175, %s174, 16
        %s177 = smul.u32 128, %s176
        %p178 = scmp.lt.s32.totalorder %s173, 37
        %s179 = scalar_select %p178, %s173, 37
        %s180 = smul.addr %s179, 8
        %s181 = scalar_lea.vmem %s0, %s180
        %s182 = smul.u32 16, %s14
        %s183 = ssub.s32 38, %s182
        %p184 = scmp.lt.s32.totalorder %s183, 16
        %s185 = scalar_select %p184, %s183, 16
        %s186 = smul.u32 128, %s185
        %s187 = smul.u32 16, %s14
        %s188 = ssub.s32 38, %s187
        %p189 = scmp.lt.s32.totalorder %s188, 16
        %s190 = scalar_select %p189, %s188, 16
        %s191 = smul.u32 128, %s190
        %v192 = vld [vmem:[%s181] sm:$0xff]
        %v193 = vld [vmem:[%s181 + $0x8] sm:$0xff]
        %v194 = vld [vmem:[%s181 + $0x10] sm:$0xff]
        %v195 = vld [vmem:[%s181 + $0x18] sm:$0xff]
        %v196 = vld [vmem:[%s181 + $0x20] sm:$0xff]
        %v197 = vld [vmem:[%s181 + $0x28] sm:$0xff]
        %v198 = vld [vmem:[%s181 + $0x30] sm:$0xff]
        %v199 = vld [vmem:[%s181 + $0x38] sm:$0xff]
        %v200 = vld [vmem:[%s181 + $0x40] sm:$0xff]
        %v201 = vld [vmem:[%s181 + $0x48] sm:$0xff]
        %v202 = vld [vmem:[%s181 + $0x50] sm:$0xff]
        %v203 = vld [vmem:[%s181 + $0x58] sm:$0xff]
        %v204 = vld [vmem:[%s181 + $0x60] sm:$0xff]
        %v205 = vld [vmem:[%s181 + $0x68] sm:$0xff]
        %v206 = vld [vmem:[%s181 + $0x70] sm:$0xff]
        %v207 = vld [vmem:[%s181 + $0x78] sm:$0xff]
        %v208 = vld [vmem:[%s1] sm:$0xff]
        %v209 = vld [vmem:[%s1 + $0x8] sm:$0xff]
        %v210 = vld [vmem:[%s1 + $0x10] sm:$0xff]
        %v211 = vld [vmem:[%s1 + $0x18] sm:$0xff]
        %vm212 = vcmask 130048
        %v214 = vsel %vm212, %v192, 0
        %v217 = vsel %vm212, %v193, 0
        %v220 = vsel %vm212, %v194, 0
        %v223 = vsel %vm212, %v195, 0
        %v226 = vsel %vm212, %v196, 0
        %v229 = vsel %vm212, %v197, 0
        %v232 = vsel %vm212, %v198, 0
        %v235 = vsel %vm212, %v199, 0
        %v238 = vsel %vm212, %v200, 0
        %v241 = vsel %vm212, %v201, 0
        %v244 = vsel %vm212, %v202, 0
        %v247 = vsel %vm212, %v203, 0
        %v250 = vsel %vm212, %v204, 0
        %v253 = vsel %vm212, %v205, 0
        %v256 = vsel %vm212, %v206, 0
        %v259 = vsel %vm212, %v207, 0
        %v262 = vsel %vm212, %v208, 0
        %v265 = vsel %vm212, %v209, 0
        %v268 = vsel %vm212, %v210, 0
        %v271 = vsel %vm212, %v211, 0
        %273 = vmatprep.subr.mxu0 0.0
        %274 = vmatpush1.xpose.msra.mxu0 0.0
        %275 = vmatprep.subr.mxu0 0.0
        %276 = vmatpush1.xpose.msra.mxu0 0.0
        %277 = vmatprep.subr.mxu0 0.0
        %278 = vmatpush1.xpose.msra.mxu0 0.0
        %279 = vmatprep.subr.mxu0 0.0
        %280 = vmatpush1.xpose.msra.mxu0 0.0
        %281 = vmatprep.subr.mxu0 0.0
        %282 = vmatpush1.xpose.msra.mxu0 0.0
        %283 = vmatprep.subr.mxu0 0.0
        %284 = vmatpush1.xpose.msra.mxu0 0.0
        %285 = vmatprep.subr.mxu0 0.0
        %286 = vmatpush1.xpose.msra.mxu0 0.0
        %287 = vmatprep.subr.mxu0 0.0
        %288 = vmatpush1.xpose.msra.mxu0 0.0
        %289 = vmatprep.subr.mxu0 0.0
        %290 = vmatpush1.xpose.msra.mxu0 0.0
        %291 = vmatprep.subr.mxu0 0.0
        %292 = vmatpush1.xpose.msra.mxu0 0.0
        %293 = vmatprep.subr.mxu0 0.0
        %294 = vmatpush1.xpose.msra.mxu0 0.0
        %295 = vmatprep.subr.mxu0 0.0
        %296 = vmatpush1.xpose.msra.mxu0 0.0
        %297 = vmatprep.subr.mxu0 0.0
        %298 = vmatpush1.xpose.msra.mxu0 %v271
        %299 = vmatprep.subr.mxu0 0.0
        %300 = vmatpush1.xpose.msra.mxu0 %v268
        %301 = vmatprep.subr.mxu0 0.0
        %302 = vmatpush1.xpose.msra.mxu0 %v265
        %303 = vmatprep.subr.mxu0 0.0
        %304 = vmatpush1.xpose.msra.mxu0 %v262
        %305 = vmatprep.subr.mxu0 0.0
        %306 = vmatpush2.xpose.msra.mxu0 0.0
        %307 = vmatprep.subr.mxu0 0.0
        %308 = vmatpush2.xpose.msra.mxu0 0.0
        %309 = vmatprep.subr.mxu0 0.0
        %310 = vmatpush2.xpose.msra.mxu0 0.0
        %311 = vmatprep.subr.mxu0 0.0
        %312 = vmatpush2.xpose.msra.mxu0 0.0
        %313 = vmatprep.subr.mxu0 0.0
        %314 = vmatpush2.xpose.msra.mxu0 0.0
        %315 = vmatprep.subr.mxu0 0.0
        %316 = vmatpush2.xpose.msra.mxu0 0.0
        %317 = vmatprep.subr.mxu0 0.0
        %318 = vmatpush2.xpose.msra.mxu0 0.0
        %319 = vmatprep.subr.mxu0 0.0
        %320 = vmatpush2.xpose.msra.mxu0 0.0
        %321 = vmatprep.subr.mxu0 0.0
        %322 = vmatpush2.xpose.msra.mxu0 0.0
        %323 = vmatprep.subr.mxu0 0.0
        %324 = vmatpush2.xpose.msra.mxu0 0.0
        %325 = vmatprep.subr.mxu0 0.0
        %326 = vmatpush2.xpose.msra.mxu0 0.0
        %327 = vmatprep.subr.mxu0 0.0
        %328 = vmatpush2.xpose.msra.mxu0 0.0
        %329 = vmatprep.subr.mxu0 0.0
        %330 = vmatpush2.xpose.msra.mxu0 0.0
        %331 = vmatprep.subr.mxu0 0.0
        %332 = vmatpush2.xpose.msra.mxu0 0.0
        %333 = vmatprep.subr.mxu0 0.0
        %334 = vmatpush2.xpose.msra.mxu0 0.0
        %335 = vmatprep.subr.mxu0 0.0
        %336 = vmatpush2.xpose.msra.mxu0 0.0
        %337 = vmatprep.mubr.f32.mxu0 0.0
        %338 = vmatmul.mubr.f32.gmra.mxu0 %v214
        %v339 = vpop.f32.mrf.mxu0
        %v340 = vadd.f32 0.0, %v339
        %v341 = vpop.f32.mrf.mxu0
        %342 = vmatprep.mubr.f32.mxu0 0.0
        %343 = vmatmul.mubr.f32.gmra.mxu0 %v217
        %v344 = vpop.f32.mrf.mxu0
        %v345 = vadd.f32 0.0, %v344
        %v346 = vpop.f32.mrf.mxu0
        %347 = vmatprep.mubr.f32.mxu0 0.0
        %348 = vmatmul.mubr.f32.gmra.mxu0 %v220
        %v349 = vpop.f32.mrf.mxu0
        %v350 = vadd.f32 0.0, %v349
        %v351 = vpop.f32.mrf.mxu0
        %352 = vmatprep.mubr.f32.mxu0 0.0
        %353 = vmatmul.mubr.f32.gmra.mxu0 %v223
        %v354 = vpop.f32.mrf.mxu0
        %v355 = vadd.f32 0.0, %v354
        %v356 = vpop.f32.mrf.mxu0
        %357 = vmatprep.mubr.f32.mxu0 0.0
        %358 = vmatmul.mubr.f32.gmra.mxu0 %v226
        %v359 = vpop.f32.mrf.mxu0
        %v360 = vadd.f32 0.0, %v359
        %v361 = vpop.f32.mrf.mxu0
        %362 = vmatprep.mubr.f32.mxu0 0.0
        %363 = vmatmul.mubr.f32.gmra.mxu0 %v229
        %v364 = vpop.f32.mrf.mxu0
        %v365 = vadd.f32 0.0, %v364
        %v366 = vpop.f32.mrf.mxu0
        %367 = vmatprep.mubr.f32.mxu0 0.0
        %368 = vmatmul.mubr.f32.gmra.mxu0 %v232
        %v369 = vpop.f32.mrf.mxu0
        %v370 = vadd.f32 0.0, %v369
        %v371 = vpop.f32.mrf.mxu0
        %372 = vmatprep.mubr.f32.mxu0 0.0
        %373 = vmatmul.mubr.f32.gmra.mxu0 %v235
        %v374 = vpop.f32.mrf.mxu0
        %v375 = vadd.f32 0.0, %v374
        %v376 = vpop.f32.mrf.mxu0
        %377 = vmatprep.mubr.f32.mxu0 0.0
        %378 = vmatmul.mubr.f32.gmra.mxu0 %v238
        %v379 = vpop.f32.mrf.mxu0
        %v380 = vadd.f32 0.0, %v379
        %v381 = vpop.f32.mrf.mxu0
        %382 = vmatprep.mubr.f32.mxu0 0.0
        %383 = vmatmul.mubr.f32.gmra.mxu0 %v241
        %v384 = vpop.f32.mrf.mxu0
        %v385 = vadd.f32 0.0, %v384
        %v386 = vpop.f32.mrf.mxu0
        %387 = vmatprep.mubr.f32.mxu0 0.0
        %388 = vmatmul.mubr.f32.gmra.mxu0 %v244
        %v389 = vpop.f32.mrf.mxu0
        %v390 = vadd.f32 0.0, %v389
        %v391 = vpop.f32.mrf.mxu0
        %392 = vmatprep.mubr.f32.mxu0 0.0
        %393 = vmatmul.mubr.f32.gmra.mxu0 %v247
        %v394 = vpop.f32.mrf.mxu0
        %v395 = vadd.f32 0.0, %v394
        %v396 = vpop.f32.mrf.mxu0
        %397 = vmatprep.mubr.f32.mxu0 0.0
        %398 = vmatmul.mubr.f32.gmra.mxu0 %v250
        %v399 = vpop.f32.mrf.mxu0
        %v400 = vadd.f32 0.0, %v399
        %v401 = vpop.f32.mrf.mxu0
        %402 = vmatprep.mubr.f32.mxu0 0.0
        %403 = vmatmul.mubr.f32.gmra.mxu0 %v253
        %v404 = vpop.f32.mrf.mxu0
        %v405 = vadd.f32 0.0, %v404
        %v406 = vpop.f32.mrf.mxu0
        %407 = vmatprep.mubr.f32.mxu0 0.0
        %408 = vmatmul.mubr.f32.gmra.mxu0 %v256
        %v409 = vpop.f32.mrf.mxu0
        %v410 = vadd.f32 0.0, %v409
        %v411 = vpop.f32.mrf.mxu0
        %412 = vmatprep.mubr.f32.mxu0 0.0
        %413 = vmatmul.mubr.f32.gmra.mxu0 %v259
        %v414 = vpop.f32.mrf.mxu0
        %v415 = vadd.f32 0.0, %v414
        %v416 = vpop.f32.mrf.mxu0
        %417 = vdwg.mxu0
        %v418 = vtanh.pop %v340
        %v419 = vtanh.pop %v345
        %v420 = vtanh.pop %v350
        %v421 = vtanh.pop %v355
        %v422 = vtanh.pop %v360
        %v423 = vtanh.pop %v365
        %v424 = vtanh.pop %v370
        %v425 = vtanh.pop %v375
        %v426 = vtanh.pop %v380
        %v427 = vtanh.pop %v385
        %v428 = vtanh.pop %v390
        %v429 = vtanh.pop %v395
        %v430 = vtanh.pop %v400
        %v431 = vtanh.pop %v405
        %v432 = vtanh.pop %v410
        %v433 = vtanh.pop %v415
        %v434 = vld [vmem:[%s2] sm:$0xff]
        %vm435 = vcmask 261120
        %v437 = vsel %vm435, %v418, 0
        %v440 = vsel %vm435, %v419, 0
        %v443 = vsel %vm435, %v420, 0
        %v446 = vsel %vm435, %v421, 0
        %v449 = vsel %vm435, %v422, 0
        %v452 = vsel %vm435, %v423, 0
        %v455 = vsel %vm435, %v424, 0
        %v458 = vsel %vm435, %v425, 0
        %v461 = vsel %vm435, %v426, 0
        %v464 = vsel %vm435, %v427, 0
        %v467 = vsel %vm435, %v428, 0
        %v470 = vsel %vm435, %v429, 0
        %v473 = vsel %vm435, %v430, 0
        %v476 = vsel %vm435, %v431, 0
        %v479 = vsel %vm435, %v432, 0
        %v482 = vsel %vm435, %v433, 0
        %v485 = vsel %vm435, %v434, 0
        %487 = vmatprep.subr.mxu0 0.0
        %488 = vmatpush1.xpose.msra.mxu0 0.0
        %489 = vmatprep.subr.mxu0 0.0
        %490 = vmatpush1.xpose.msra.mxu0 0.0
        %491 = vmatprep.subr.mxu0 0.0
        %492 = vmatpush1.xpose.msra.mxu0 0.0
        %493 = vmatprep.subr.mxu0 0.0
        %494 = vmatpush1.xpose.msra.mxu0 0.0
        %495 = vmatprep.subr.mxu0 0.0
        %496 = vmatpush1.xpose.msra.mxu0 0.0
        %497 = vmatprep.subr.mxu0 0.0
        %498 = vmatpush1.xpose.msra.mxu0 0.0
        %499 = vmatprep.subr.mxu0 0.0
        %500 = vmatpush1.xpose.msra.mxu0 0.0
        %501 = vmatprep.subr.mxu0 0.0
        %502 = vmatpush1.xpose.msra.mxu0 0.0
        %503 = vmatprep.subr.mxu0 0.0
        %504 = vmatpush1.xpose.msra.mxu0 0.0
        %505 = vmatprep.subr.mxu0 0.0
        %506 = vmatpush1.xpose.msra.mxu0 0.0
        %507 = vmatprep.subr.mxu0 0.0
        %508 = vmatpush1.xpose.msra.mxu0 0.0
        %509 = vmatprep.subr.mxu0 0.0
        %510 = vmatpush1.xpose.msra.mxu0 0.0
        %511 = vmatprep.subr.mxu0 0.0
        %512 = vmatpush1.xpose.msra.mxu0 0.0
        %513 = vmatprep.subr.mxu0 0.0
        %514 = vmatpush1.xpose.msra.mxu0 0.0
        %515 = vmatprep.subr.mxu0 0.0
        %516 = vmatpush1.xpose.msra.mxu0 0.0
        %517 = vmatprep.subr.mxu0 0.0
        %518 = vmatpush1.xpose.msra.mxu0 %v485
        %519 = vmatprep.subr.mxu0 0.0
        %520 = vmatpush2.xpose.msra.mxu0 0.0
        %521 = vmatprep.subr.mxu0 0.0
        %522 = vmatpush2.xpose.msra.mxu0 0.0
        %523 = vmatprep.subr.mxu0 0.0
        %524 = vmatpush2.xpose.msra.mxu0 0.0
        %525 = vmatprep.subr.mxu0 0.0
        %526 = vmatpush2.xpose.msra.mxu0 0.0
        %527 = vmatprep.subr.mxu0 0.0
        %528 = vmatpush2.xpose.msra.mxu0 0.0
        %529 = vmatprep.subr.mxu0 0.0
        %530 = vmatpush2.xpose.msra.mxu0 0.0
        %531 = vmatprep.subr.mxu0 0.0
        %532 = vmatpush2.xpose.msra.mxu0 0.0
        %533 = vmatprep.subr.mxu0 0.0
        %534 = vmatpush2.xpose.msra.mxu0 0.0
        %535 = vmatprep.subr.mxu0 0.0
        %536 = vmatpush2.xpose.msra.mxu0 0.0
        %537 = vmatprep.subr.mxu0 0.0
        %538 = vmatpush2.xpose.msra.mxu0 0.0
        %539 = vmatprep.subr.mxu0 0.0
        %540 = vmatpush2.xpose.msra.mxu0 0.0
        %541 = vmatprep.subr.mxu0 0.0
        %542 = vmatpush2.xpose.msra.mxu0 0.0
        %543 = vmatprep.subr.mxu0 0.0
        %544 = vmatpush2.xpose.msra.mxu0 0.0
        %545 = vmatprep.subr.mxu0 0.0
        %546 = vmatpush2.xpose.msra.mxu0 0.0
        %547 = vmatprep.subr.mxu0 0.0
        %548 = vmatpush2.xpose.msra.mxu0 0.0
        %549 = vmatprep.subr.mxu0 0.0
        %550 = vmatpush2.xpose.msra.mxu0 0.0
        %551 = vmatprep.mubr.f32.mxu0 0.0
        %552 = vmatmul.mubr.f32.gmra.mxu0 %v437
        %v553 = vpop.f32.mrf.mxu0
        %v554 = vadd.f32 0.0, %v553
        %v555 = vpop.f32.mrf.mxu0
        %556 = vmatprep.mubr.f32.mxu0 0.0
        %557 = vmatmul.mubr.f32.gmra.mxu0 %v440
        %v558 = vpop.f32.mrf.mxu0
        %v559 = vadd.f32 0.0, %v558
        %v560 = vpop.f32.mrf.mxu0
        %561 = vmatprep.mubr.f32.mxu0 0.0
        %562 = vmatmul.mubr.f32.gmra.mxu0 %v443
        %v563 = vpop.f32.mrf.mxu0
        %v564 = vadd.f32 0.0, %v563
        %v565 = vpop.f32.mrf.mxu0
        %566 = vmatprep.mubr.f32.mxu0 0.0
        %567 = vmatmul.mubr.f32.gmra.mxu0 %v446
        %v568 = vpop.f32.mrf.mxu0
        %v569 = vadd.f32 0.0, %v568
        %v570 = vpop.f32.mrf.mxu0
        %571 = vmatprep.mubr.f32.mxu0 0.0
        %572 = vmatmul.mubr.f32.gmra.mxu0 %v449
        %v573 = vpop.f32.mrf.mxu0
        %v574 = vadd.f32 0.0, %v573
        %v575 = vpop.f32.mrf.mxu0
        %576 = vmatprep.mubr.f32.mxu0 0.0
        %577 = vmatmul.mubr.f32.gmra.mxu0 %v452
        %v578 = vpop.f32.mrf.mxu0
        %v579 = vadd.f32 0.0, %v578
        %v580 = vpop.f32.mrf.mxu0
        %581 = vmatprep.mubr.f32.mxu0 0.0
        %582 = vmatmul.mubr.f32.gmra.mxu0 %v455
        %v583 = vpop.f32.mrf.mxu0
        %v584 = vadd.f32 0.0, %v583
        %v585 = vpop.f32.mrf.mxu0
        %586 = vmatprep.mubr.f32.mxu0 0.0
        %587 = vmatmul.mubr.f32.gmra.mxu0 %v458
        %v588 = vpop.f32.mrf.mxu0
        %v589 = vadd.f32 0.0, %v588
        %v590 = vpop.f32.mrf.mxu0
        %591 = vmatprep.mubr.f32.mxu0 0.0
        %592 = vmatmul.mubr.f32.gmra.mxu0 %v461
        %v593 = vpop.f32.mrf.mxu0
        %v594 = vadd.f32 0.0, %v593
        %v595 = vpop.f32.mrf.mxu0
        %596 = vmatprep.mubr.f32.mxu0 0.0
        %597 = vmatmul.mubr.f32.gmra.mxu0 %v464
        %v598 = vpop.f32.mrf.mxu0
        %v599 = vadd.f32 0.0, %v598
        %v600 = vpop.f32.mrf.mxu0
        %601 = vmatprep.mubr.f32.mxu0 0.0
        %602 = vmatmul.mubr.f32.gmra.mxu0 %v467
        %v603 = vpop.f32.mrf.mxu0
        %v604 = vadd.f32 0.0, %v603
        %v605 = vpop.f32.mrf.mxu0
        %606 = vmatprep.mubr.f32.mxu0 0.0
        %607 = vmatmul.mubr.f32.gmra.mxu0 %v470
        %v608 = vpop.f32.mrf.mxu0
        %v609 = vadd.f32 0.0, %v608
        %v610 = vpop.f32.mrf.mxu0
        %611 = vmatprep.mubr.f32.mxu0 0.0
        %612 = vmatmul.mubr.f32.gmra.mxu0 %v473
        %v613 = vpop.f32.mrf.mxu0
        %v614 = vadd.f32 0.0, %v613
        %v615 = vpop.f32.mrf.mxu0
        %616 = vmatprep.mubr.f32.mxu0 0.0
        %617 = vmatmul.mubr.f32.gmra.mxu0 %v476
        %v618 = vpop.f32.mrf.mxu0
        %v619 = vadd.f32 0.0, %v618
        %v620 = vpop.f32.mrf.mxu0
        %621 = vmatprep.mubr.f32.mxu0 0.0
        %622 = vmatmul.mubr.f32.gmra.mxu0 %v479
        %v623 = vpop.f32.mrf.mxu0
        %v624 = vadd.f32 0.0, %v623
        %v625 = vpop.f32.mrf.mxu0
        %626 = vmatprep.mubr.f32.mxu0 0.0
        %627 = vmatmul.mubr.f32.gmra.mxu0 %v482
        %v628 = vpop.f32.mrf.mxu0
        %v629 = vadd.f32 0.0, %v628
        %v630 = vpop.f32.mrf.mxu0
        %631 = vdwg.mxu0
        %v632 = vtanh.pop %v554
        %v633 = vtanh.pop %v559
        %v634 = vtanh.pop %v564
        %v635 = vtanh.pop %v569
        %v636 = vtanh.pop %v574
        %v637 = vtanh.pop %v579
        %v638 = vtanh.pop %v584
        %v639 = vtanh.pop %v589
        %v640 = vtanh.pop %v594
        %v641 = vtanh.pop %v599
        %v642 = vtanh.pop %v604
        %v643 = vtanh.pop %v609
        %v644 = vtanh.pop %v614
        %v645 = vtanh.pop %v619
        %v646 = vtanh.pop %v624
        %v647 = vtanh.pop %v629
        %vm648 = vcmask 64512
        %649 = vst.msk [vmem:[%s172] sm:$0xff] %vm648, %v632
        %650 = vst.msk [vmem:[%s172 + $0x8] sm:$0xff] %vm648, %v633
        %651 = vst.msk [vmem:[%s172 + $0x10] sm:$0xff] %vm648, %v634
        %652 = vst.msk [vmem:[%s172 + $0x18] sm:$0xff] %vm648, %v635
        %653 = vst.msk [vmem:[%s172 + $0x20] sm:$0xff] %vm648, %v636
        %654 = vst.msk [vmem:[%s172 + $0x28] sm:$0xff] %vm648, %v637
        %655 = vst.msk [vmem:[%s172 + $0x30] sm:$0xff] %vm648, %v638
        %656 = vst.msk [vmem:[%s172 + $0x38] sm:$0xff] %vm648, %v639
        %657 = vst.msk [vmem:[%s172 + $0x40] sm:$0xff] %vm648, %v640
        %658 = vst.msk [vmem:[%s172 + $0x48] sm:$0xff] %vm648, %v641
        %659 = vst.msk [vmem:[%s172 + $0x50] sm:$0xff] %vm648, %v642
        %660 = vst.msk [vmem:[%s172 + $0x58] sm:$0xff] %vm648, %v643
        %661 = vst.msk [vmem:[%s172 + $0x60] sm:$0xff] %vm648, %v644
        %662 = vst.msk [vmem:[%s172 + $0x68] sm:$0xff] %vm648, %v645
        %663 = vst.msk [vmem:[%s172 + $0x70] sm:$0xff] %vm648, %v646
        %664 = vst.msk [vmem:[%s172 + $0x78] sm:$0xff] %vm648, %v647
        %s665 = sand.u32 %s90, 1
        %s666 = sand.u32 %s90, 1
        %s667 = smul.addr %s666, 128
        %s668 = scalar_lea.vmem [#allocation2], %s667
        // Predicated region
        $region33: #{tpu_custom_call.1} parent=31 // pred_check
          %p669 = pneg %p100
        $region34: #{tpu_custom_call.1} parent=31 // pred_check_branch
          %671 = sbr.rel (%p669) target = $region36
        $region35: #{tpu_custom_call.1} parent=31 // pred_region
          %s672 = smul.u32 16, %s14
          %s673 = ssub.s32 38, %s672
          %p674 = scmp.lt.s32.totalorder %s673, 16
          %s675 = scalar_select %p674, %s673, 16
          %s676 = smul.u32 128, %s675
          %p677 = scmp.ne.s32.totalorder 0, %s676
          %s678 = smul.addr %s672, 8
          %s679 = scalar_lea.vmem %s3, %s678
          // Predicated region
          $region37: #{tpu_custom_call.1} parent=35 // pred_check
            %p680 = pneg %p677
          $region38: #{tpu_custom_call.1} parent=35 // pred_check_branch
            %682 = sbr.rel (%p680) target = $region40
          $region39: #{tpu_custom_call.1} parent=35 // pred_region
            // Predicated region
            $region41: #{tpu_custom_call.1} parent=39 // pred_check
              _
            $region42: #{tpu_custom_call.1} parent=39 // pred_check_branch
              %684 = sbr.rel (0) target = $region44
            $region43: #{tpu_custom_call.1} parent=39 // pred_region
              // Predicated region
              $region63: #{tpu_custom_call.1} parent=43 // pred_check
                _
              $region64: #{tpu_custom_call.1} parent=43 // pred_check_branch
                %764 = sbr.rel (0) target = $region66
              $region65: #{tpu_custom_call.1} parent=43 // pred_region
                %s765 = sshrl.u32 %s675, 4
                // While loop
                $region67: #{tpu_custom_call.1} parent=65 // loop_pre_header
                  _
                $region68: #{tpu_custom_call.1} parent=65 // loop_header
                  %s767 = sphi 0, %s769
                  %p768 = scmp.ge.s32.totalorder %s767, %s765
                  %s772 = sphi 0, %s809
                  %s773 = sphi %s668, %s812
                  %s774 = sphi %s679, %s813
                $region69: #{tpu_custom_call.1} parent=65 // loop_header_branch
                  %771 = sbr.rel (%p768) target = $region73
                $region70: #{tpu_custom_call.1} parent=65 // loop_body
                  %v775 = vld [vmem:[%s773] sm:$0xff]
                  %776 = vst [vmem:[%s774] sm:$0xff] %v775
                  %v777 = vld [vmem:[%s773 + $0x8] sm:$0xff]
                  %778 = vst [vmem:[%s774 + $0x8] sm:$0xff] %v777
                  %v779 = vld [vmem:[%s773 + $0x10] sm:$0xff]
                  %780 = vst [vmem:[%s774 + $0x10] sm:$0xff] %v779
                  %v781 = vld [vmem:[%s773 + $0x18] sm:$0xff]
                  %782 = vst [vmem:[%s774 + $0x18] sm:$0xff] %v781
                  %v783 = vld [vmem:[%s773 + $0x20] sm:$0xff]
                  %784 = vst [vmem:[%s774 + $0x20] sm:$0xff] %v783
                  %v785 = vld [vmem:[%s773 + $0x28] sm:$0xff]
                  %786 = vst [vmem:[%s774 + $0x28] sm:$0xff] %v785
                  %v787 = vld [vmem:[%s773 + $0x30] sm:$0xff]
                  %788 = vst [vmem:[%s774 + $0x30] sm:$0xff] %v787
                  %v789 = vld [vmem:[%s773 + $0x38] sm:$0xff]
                  %790 = vst [vmem:[%s774 + $0x38] sm:$0xff] %v789
                  %v791 = vld [vmem:[%s773 + $0x40] sm:$0xff]
                  %792 = vst [vmem:[%s774 + $0x40] sm:$0xff] %v791
                  %v793 = vld [vmem:[%s773 + $0x48] sm:$0xff]
                  %794 = vst [vmem:[%s774 + $0x48] sm:$0xff] %v793
                  %v795 = vld [vmem:[%s773 + $0x50] sm:$0xff]
                  %796 = vst [vmem:[%s774 + $0x50] sm:$0xff] %v795
                  %v797 = vld [vmem:[%s773 + $0x58] sm:$0xff]
                  %798 = vst [vmem:[%s774 + $0x58] sm:$0xff] %v797
                  %v799 = vld [vmem:[%s773 + $0x60] sm:$0xff]
                  %800 = vst [vmem:[%s774 + $0x60] sm:$0xff] %v799
                  %v801 = vld [vmem:[%s773 + $0x68] sm:$0xff]
                  %802 = vst [vmem:[%s774 + $0x68] sm:$0xff] %v801
                  %v803 = vld [vmem:[%s773 + $0x70] sm:$0xff]
                  %804 = vst [vmem:[%s774 + $0x70] sm:$0xff] %v803
                  %v805 = vld [vmem:[%s773 + $0x78] sm:$0xff]
                  %806 = vst [vmem:[%s774 + $0x78] sm:$0xff] %v805
                  %s807 = sadd.s32 1, %s772
                  %p808 = scmp.ge.s32.totalorder %s807, %s765
                  %s809 = scalar_select %p808, 0, %s807
                  %s810 = smul.u32 %s809, 128
                  %s811 = smul.u32 %s809, 128
                  %s812 = scalar_lea.vmem %s668, %s810 [#allocation2]
                  %s813 = scalar_lea.vmem %s679, %s811
                $region71: #{tpu_custom_call.1} parent=65 // loop_footer
                  %s769 = sadd.s32 %s767, 1
                $region72: #{tpu_custom_call.1} parent=65 // loop_footer_branch
                  %766 = sbr.rel target = $region68
                $region73: #{tpu_custom_call.1} parent=65 // loop_exit
                  _
                %s814 = sshrl.u32 %s675, 4
                %s815 = sand.u32 %s675, 15
                %s816 = smul.u32 %s814, 16
                %s817 = smul.u32 8, %s816
                %s818 = scalar_lea.vmem %s668, %s817 [#allocation2]
                %s819 = smul.u32 8, %s816
                %s820 = scalar_lea.vmem %s679, %s819
                // While loop
                $region74: #{tpu_custom_call.1} parent=65 // loop_pre_header
                  _
                $region75: #{tpu_custom_call.1} parent=65 // loop_header
                  %s822 = sphi 0, %s824
                  %p823 = scmp.ge.s32.totalorder %s822, %s815
                  %s827 = sphi 0, %s834
                  %s828 = sphi %s818, %s837
                  %s829 = sphi %s820, %s838
                $region76: #{tpu_custom_call.1} parent=65 // loop_header_branch
                  %826 = sbr.rel (%p823) target = $region80
                $region77: #{tpu_custom_call.1} parent=65 // loop_body
                  %v830 = vld [vmem:[%s828] sm:$0xff]
                  %831 = vst [vmem:[%s829] sm:$0xff] %v830
                  %s832 = sadd.s32 1, %s827
                  %p833 = scmp.ge.s32.totalorder %s832, %s815
                  %s834 = scalar_select %p833, 0, %s832
                  %s835 = smul.u32 %s834, 8
                  %s836 = smul.u32 %s834, 8
                  %s837 = scalar_lea.vmem %s818, %s835 [#allocation2]
                  %s838 = scalar_lea.vmem %s820, %s836
                $region78: #{tpu_custom_call.1} parent=65 // loop_footer
                  %s824 = sadd.s32 %s822, 1
                $region79: #{tpu_custom_call.1} parent=65 // loop_footer_branch
                  %821 = sbr.rel target = $region75
                $region80: #{tpu_custom_call.1} parent=65 // loop_exit
                  _
              $region66: #{tpu_custom_call.1} parent=43 // pred_fallthru
                _
              // Predicated region
              $region81: #{tpu_custom_call.1} parent=43 // pred_check
                _
              $region82: #{tpu_custom_call.1} parent=43 // pred_check_branch
                %840 = sbr.rel target = $region84
              $region83: #{tpu_custom_call.1} parent=43 // pred_region
                _
              $region84: #{tpu_custom_call.1} parent=43 // pred_fallthru
                _
            $region44: #{tpu_custom_call.1} parent=39 // pred_fallthru
              _
            // Predicated region
            $region45: #{tpu_custom_call.1} parent=39 // pred_check
              _
            $region46: #{tpu_custom_call.1} parent=39 // pred_check_branch
              %686 = sbr.rel target = $region48
            $region47: #{tpu_custom_call.1} parent=39 // pred_region
              %s688 = ssub.s32 256, 1
              %s689 = sshrl.u32 %s675, 4
              // While loop
              $region49: #{tpu_custom_call.1} parent=47 // loop_pre_header
                _
              $region50: #{tpu_custom_call.1} parent=47 // loop_header
                %s691 = sphi 0, %s693
                %p692 = scmp.ge.s32.totalorder %s691, %s689
                %s696 = sphi 0, %s733
                %s697 = sphi %s668, %s736
                %s698 = sphi %s679, %s737
              $region51: #{tpu_custom_call.1} parent=47 // loop_header_branch
                %695 = sbr.rel (%p692) target = $region55
              $region52: #{tpu_custom_call.1} parent=47 // loop_body
                %v699 = vld [vmem:[%s697] sm:%s688]
                %700 = vst [vmem:[%s698] sm:%s688] %v699
                %v701 = vld [vmem:[%s697 + $0x8] sm:%s688]
                %702 = vst [vmem:[%s698 + $0x8] sm:%s688] %v701
                %v703 = vld [vmem:[%s697 + $0x10] sm:%s688]
                %704 = vst [vmem:[%s698 + $0x10] sm:%s688] %v703
                %v705 = vld [vmem:[%s697 + $0x18] sm:%s688]
                %706 = vst [vmem:[%s698 + $0x18] sm:%s688] %v705
                %v707 = vld [vmem:[%s697 + $0x20] sm:%s688]
                %708 = vst [vmem:[%s698 + $0x20] sm:%s688] %v707
                %v709 = vld [vmem:[%s697 + $0x28] sm:%s688]
                %710 = vst [vmem:[%s698 + $0x28] sm:%s688] %v709
                %v711 = vld [vmem:[%s697 + $0x30] sm:%s688]
                %712 = vst [vmem:[%s698 + $0x30] sm:%s688] %v711
                %v713 = vld [vmem:[%s697 + $0x38] sm:%s688]
                %714 = vst [vmem:[%s698 + $0x38] sm:%s688] %v713
                %v715 = vld [vmem:[%s697 + $0x40] sm:%s688]
                %716 = vst [vmem:[%s698 + $0x40] sm:%s688] %v715
                %v717 = vld [vmem:[%s697 + $0x48] sm:%s688]
                %718 = vst [vmem:[%s698 + $0x48] sm:%s688] %v717
                %v719 = vld [vmem:[%s697 + $0x50] sm:%s688]
                %720 = vst [vmem:[%s698 + $0x50] sm:%s688] %v719
                %v721 = vld [vmem:[%s697 + $0x58] sm:%s688]
                %722 = vst [vmem:[%s698 + $0x58] sm:%s688] %v721
                %v723 = vld [vmem:[%s697 + $0x60] sm:%s688]
                %724 = vst [vmem:[%s698 + $0x60] sm:%s688] %v723
                %v725 = vld [vmem:[%s697 + $0x68] sm:%s688]
                %726 = vst [vmem:[%s698 + $0x68] sm:%s688] %v725
                %v727 = vld [vmem:[%s697 + $0x70] sm:%s688]
                %728 = vst [vmem:[%s698 + $0x70] sm:%s688] %v727
                %v729 = vld [vmem:[%s697 + $0x78] sm:%s688]
                %730 = vst [vmem:[%s698 + $0x78] sm:%s688] %v729
                %s731 = sadd.s32 1, %s696
                %p732 = scmp.ge.s32.totalorder %s731, %s689
                %s733 = scalar_select %p732, 0, %s731
                %s734 = smul.u32 %s733, 128
                %s735 = smul.u32 %s733, 128
                %s736 = scalar_lea.vmem %s668, %s734 [#allocation2]
                %s737 = scalar_lea.vmem %s679, %s735
              $region53: #{tpu_custom_call.1} parent=47 // loop_footer
                %s693 = sadd.s32 %s691, 1
              $region54: #{tpu_custom_call.1} parent=47 // loop_footer_branch
                %690 = sbr.rel target = $region50
              $region55: #{tpu_custom_call.1} parent=47 // loop_exit
                _
              %s738 = sshrl.u32 %s675, 4
              %s739 = sand.u32 %s675, 15
              %s740 = smul.u32 %s738, 16
              %s741 = smul.u32 8, %s740
              %s742 = scalar_lea.vmem %s668, %s741 [#allocation2]
              %s743 = smul.u32 8, %s740
              %s744 = scalar_lea.vmem %s679, %s743
              // While loop
              $region56: #{tpu_custom_call.1} parent=47 // loop_pre_header
                _
              $region57: #{tpu_custom_call.1} parent=47 // loop_header
                %s746 = sphi 0, %s748
                %p747 = scmp.ge.s32.totalorder %s746, %s739
                %s751 = sphi 0, %s758
                %s752 = sphi %s742, %s761
                %s753 = sphi %s744, %s762
              $region58: #{tpu_custom_call.1} parent=47 // loop_header_branch
                %750 = sbr.rel (%p747) target = $region62
              $region59: #{tpu_custom_call.1} parent=47 // loop_body
                %v754 = vld [vmem:[%s752] sm:%s688]
                %755 = vst [vmem:[%s753] sm:%s688] %v754
                %s756 = sadd.s32 1, %s751
                %p757 = scmp.ge.s32.totalorder %s756, %s739
                %s758 = scalar_select %p757, 0, %s756
                %s759 = smul.u32 %s758, 8
                %s760 = smul.u32 %s758, 8
                %s761 = scalar_lea.vmem %s742, %s759 [#allocation2]
                %s762 = scalar_lea.vmem %s744, %s760
              $region60: #{tpu_custom_call.1} parent=47 // loop_footer
                %s748 = sadd.s32 %s746, 1
              $region61: #{tpu_custom_call.1} parent=47 // loop_footer_branch
                %745 = sbr.rel target = $region57
              $region62: #{tpu_custom_call.1} parent=47 // loop_exit
                _
            $region48: #{tpu_custom_call.1} parent=39 // pred_fallthru
              _
          $region40: #{tpu_custom_call.1} parent=35 // pred_fallthru
            _
          %841 = vnop
        $region36: #{tpu_custom_call.1} parent=31 // pred_fallthru
          _
      $region32: #{tpu_custom_call.1} parent=5 // pred_fallthru
        _
      %p842 = scmp.le.s32.totalorder 2, %s9
      // Predicated region
      $region85: #{tpu_custom_call.1} parent=5 // pred_check
        %p843 = pneg %p842
      $region86: #{tpu_custom_call.1} parent=5 // pred_check_branch
        %845 = sbr.rel (%p843) target = $region88
      $region87: #{tpu_custom_call.1} parent=5 // pred_region
        %s846 = ssub.s32 %s9, 2
        // Predicated region
        $region89: #{tpu_custom_call.1} parent=87 // pred_check
          %p847 = pneg %p106
        $region90: #{tpu_custom_call.1} parent=87 // pred_check_branch
          %849 = sbr.rel (%p847) target = $region92
        $region91: #{tpu_custom_call.1} parent=87 // pred_region
          %s850 = sand.u32 %s91, 1
          %s851 = sand.u32 %s91, 1
          %s852 = smul.addr %s851, 128
          %s853 = scalar_lea.vmem [#allocation2], %s852
        $region92: #{tpu_custom_call.1} parent=87 // pred_fallthru
          _
      $region88: #{tpu_custom_call.1} parent=5 // pred_fallthru
        _
    $region6: #{tpu_custom_call.1} parent=1 // loop_footer
      %s13 = sadd.s32 1, %s9
    $region7: #{tpu_custom_call.1} parent=1 // loop_footer_branch
      %8 = sbr.rel target = $region3
    $region8: #{tpu_custom_call.1} parent=1 // loop_exit
      _

</llo_original>
